<compile_context>
chip_gen: v5e
topology: v5e:2x2
jax: 0.10.0
libtpu: 0.0.40
codegen_flags: <defaults>
</compile_context>

<pallas_src>
import functools

import jax
import jax.numpy as jnp
from jax.experimental import pallas as pl
from jax.experimental.pallas import tpu as pltpu

# Column block size streamed per grid step (review: ~512 for v6e/v7x; the
# 32 MiB vmem_limit below keeps v5e inside budget as well).
_BLOCK_COLS = 512


def _pairwise_dist_reduce_kernel(normal_ref, half_sq_n_ref, cols_t_ref,
                                 sq_cols_ref, out_ref, *, mode, margin):
    """Per column j of the current block:
         mode == "max": out[j] = max_i ||normal_i - col_j||
         mode == "min": out[j] = clamp(margin - min_i ||normal_i - col_j||, 0)
    """
    # MXU: canonical (n, D) x (D, blk) matmul, input dtype, f32 accumulate.
    dot = jnp.dot(normal_ref[...], cols_t_ref[...],
                  preferred_element_type=jnp.float32)            # (n, blk)

    # Quadratic region: a single VPU subtract per element (column broadcast),
    # then an XLU sublane reduce.  Row norms / clamp / sqrt are all deferred.
    pre = half_sq_n_ref[...] - dot                               # (n, blk)
    if mode == "max":
        r = jnp.max(pre, axis=0, keepdims=True)                  # (1, blk)
    else:
        r = jnp.min(pre, axis=0, keepdims=True)                  # (1, blk)

    # Post-reduce, O(blk) work only: undo the 1/2 scaling, add the per-column
    # norms, clamp (numerical safety) and sqrt.
    d2 = jnp.maximum(r + r + sq_cols_ref[...], 0.0)              # (1, blk)
    d = jnp.sqrt(d2)                                             # (1, blk)

    if mode == "max":
        out_ref[...] = d
    else:
        out_ref[...] = jnp.maximum(margin - d, 0.0)


def _pairwise_dist_reduce(normal, half_sq_n_col, cols_t, sq_cols_row, *,
                          mode, margin, block_cols=_BLOCK_COLS):
    n, d = normal.shape
    n_cols = cols_t.shape[1]
    blk = n_cols if n_cols <= block_cols else block_cols
    grid = (pl.cdiv(n_cols, blk),)

    kernel = functools.partial(_pairwise_dist_reduce_kernel,
                               mode=mode, margin=float(margin))
    return pl.pallas_call(
        kernel,
        out_shape=jax.ShapeDtypeStruct((1, n_cols), jnp.float32),
        grid=grid,
        in_specs=[
            pl.BlockSpec((n, d), lambda j: (0, 0)),      # normal (resident)
            pl.BlockSpec((n, 1), lambda j: (0, 0)),      # 0.5*|normal|^2 (resident)
            pl.BlockSpec((d, blk), lambda j: (0, j)),    # streamed column block
            pl.BlockSpec((1, blk), lambda j: (0, j)),    # |col|^2 for the block
        ],
        out_specs=pl.BlockSpec((1, blk), lambda j: (0, j)),
        compiler_params=pltpu.CompilerParams(
            dimension_semantics=("parallel",),
            vmem_limit_bytes=32 * 1024 * 1024,
        ),
    )(normal, half_sq_n_col, cols_t, sq_cols_row)


def triplet_loss(feats, margin=100.0):
    feats = jnp.asarray(feats)
    bs, _ = feats.shape
    n_normal = bs // 2
    n_abnormal = bs - n_normal

    normal = feats[:n_normal]
    abnormal = feats[n_normal:]

    # One fused XLA pass over feats: squared norms (f32) for both row and
    # column roles.  Loop-invariant across grid steps, so hoisted out of the
    # kernel; only tiny (n,1)/(1,cols) vectors are fed in.
    f32 = feats.astype(jnp.float32)
    sq = jnp.sum(f32 * f32, axis=-1)                   # (bs,)
    half_sq_n_col = (0.5 * sq[:n_normal])[:, None]     # (n, 1)
    sq_n_row = sq[None, :n_normal]                     # (1, n)
    sq_a_row = sq[None, n_normal:]                     # (1, m)

    # Wrapper-side layout plumbing so the kernel sees a canonical (D, cols)
    # RHS (no in-kernel transpose possible).
    normal_t = jnp.transpose(normal)                   # (D, n)
    abnormal_t = jnp.transpose(abnormal)               # (D, m)

    max_n = _pairwise_dist_reduce(normal, half_sq_n_col, normal_t, sq_n_row,
                                  mode="max", margin=margin)       # (1, n)
    hinge_a = _pairwise_dist_reduce(normal, half_sq_n_col, abnormal_t,
                                    sq_a_row, mode="min", margin=margin)  # (1, m)

    # Two tiny means + add (O(n + m)) done in the wrapper.
    return jnp.mean(max_n) + jnp.mean(hinge_a)


def _reference_triplet_loss(feats, margin=100.0):
    # Pure-JAX reference for a quick sanity check (direct-difference cdist).
    bs = feats.shape[0]
    normal = feats[: bs // 2]
    abnormal = feats[bs // 2:]

    def cdist(x, y):
        d2 = jnp.sum((x[:, None, :] - y[None, :, :]) ** 2, axis=-1)
        return jnp.sqrt(jnp.maximum(d2, 0.0))

    dist_n = cdist(normal, normal)
    dist_a = cdist(normal, abnormal)
    max_n = jnp.max(dist_n, axis=0)
    min_a = jnp.maximum(margin - jnp.min(dist_a, axis=0), 0.0)
    return jnp.mean(max_n) + jnp.mean(min_a)


if __name__ == "__main__":
    key = jax.random.PRNGKey(0)
    bs, d = 8, 32                       # feats: (batch, feature_dim)
    feats = jax.random.normal(key, (bs, d), dtype=jnp.float32) * 5.0

    loss = triplet_loss(feats, margin=100.0)
    loss = jax.block_until_ready(loss)

    ref = _reference_triplet_loss(feats, margin=100.0)
    assert jnp.isfinite(loss), "kernel produced non-finite loss"
    assert jnp.allclose(loss, ref, rtol=1e-3, atol=1e-3), (loss, ref)

    print("KERNEL_OK")
</pallas_src>

<mosaic_0001>
module attributes {stable_mosaic.version = 11 : i64} {
  func.func @_pairwise_dist_reduce_kernel(%arg0: i32, %arg1: memref<4x32xf32, #tpu.memory_space<vmem>>, %arg2: memref<4x1xf32, #tpu.memory_space<vmem>>, %arg3: memref<32x4xf32, #tpu.memory_space<vmem>>, %arg4: memref<1x4xf32, #tpu.memory_space<vmem>>, %arg5: memref<1x4xf32, #tpu.memory_space<vmem>>) attributes {dimension_semantics = [#tpu.dimension_semantics<parallel>], iteration_bounds = array<i64: 1>, scalar_prefetch = 0 : i64, scratch_operands = 0 : i64, tpu.core_type = #tpu.core_type<tc>, window_params = [{pipeline_mode = #tpu.pipeline_mode<synchronous>, transform_indices = @transform_0, window_bounds = array<i64: 4, 32>}, {pipeline_mode = #tpu.pipeline_mode<synchronous>, transform_indices = @transform_1, window_bounds = array<i64: 4, 1>}, {transform_indices = @transform_2, window_bounds = array<i64: 32, 4>}, {transform_indices = @transform_3, window_bounds = array<i64: 1, 4>}, {transform_indices = @transform_4, window_bounds = array<i64: 1, 4>}]} {
    %c0 = arith.constant 0 : index
    %c0_0 = arith.constant 0 : index
    %0 = vector.load %arg1[%c0, %c0_0] : memref<4x32xf32, #tpu.memory_space<vmem>>, vector<4x32xf32>
    %c0_1 = arith.constant 0 : index
    %c0_2 = arith.constant 0 : index
    %1 = vector.load %arg3[%c0_1, %c0_2] : memref<32x4xf32, #tpu.memory_space<vmem>>, vector<32x4xf32>
    %cst = arith.constant dense<0.000000e+00> : vector<4x4xf32>
    %2 = tpu.matmul %0, %1, %cst {dimension_numbers = #tpu.dot_dimension_numbers<[1], [0], [0], [1], [0, 0, 1, 1], [], []>} : vector<4x32xf32>, vector<32x4xf32>, vector<4x4xf32> -> vector<4x4xf32>
    %c0_3 = arith.constant 0 : index
    %c0_4 = arith.constant 0 : index
    %3 = vector.load %arg2[%c0_3, %c0_4] : memref<4x1xf32, #tpu.memory_space<vmem>>, vector<4x1xf32>
    %4 = vector.broadcast %3 : vector<4x1xf32> to vector<4x4xf32>
    %5 = arith.subf %4, %2 : vector<4x4xf32>
    %cst_5 = arith.constant dense<0xFF800000> : vector<4xf32>
    %6 = vector.multi_reduction <maximumf>, %5, %cst_5 [0] : vector<4x4xf32> to vector<4xf32>
    %7 = vector.shape_cast %6 : vector<4xf32> to vector<1x4xf32>
    %8 = arith.addf %7, %7 : vector<1x4xf32>
    %c0_6 = arith.constant 0 : index
    %c0_7 = arith.constant 0 : index
    %9 = vector.load %arg4[%c0_6, %c0_7] : memref<1x4xf32, #tpu.memory_space<vmem>>, vector<1x4xf32>
    %10 = arith.addf %8, %9 : vector<1x4xf32>
    %cst_8 = arith.constant 0.000000e+00 : f32
    %11 = vector.broadcast %cst_8 : f32 to vector<1x4xf32>
    %12 = arith.maximumf %10, %11 : vector<1x4xf32>
    %13 = math.sqrt %12 : vector<1x4xf32>
    %c0_9 = arith.constant 0 : index
    %c0_10 = arith.constant 0 : index
    %14 = vector.load %arg5[%c0_9, %c0_10] : memref<1x4xf32, #tpu.memory_space<vmem>>, vector<1x4xf32>
    tpu.vector_store %arg5[%c0_9, %c0_10], %13 {strides = array<i32>} : memref<1x4xf32, #tpu.memory_space<vmem>>, vector<1x4xf32>,
    return
  }
  func.func @transform_0(%arg0: i32) -> (i32, i32) {
    %c0_i32 = arith.constant 0 : i32
    %c0_i32_0 = arith.constant 0 : i32
    %c0_i32_1 = arith.constant 0 : i32
    return %c0_i32, %c0_i32_0 : i32, i32
  }
  func.func @transform_1(%arg0: i32) -> (i32, i32) {
    %c0_i32 = arith.constant 0 : i32
    %c0_i32_0 = arith.constant 0 : i32
    %c0_i32_1 = arith.constant 0 : i32
    return %c0_i32, %c0_i32_0 : i32, i32
  }
  func.func @transform_2(%arg0: i32) -> (i32, i32) {
    %c0_i32 = arith.constant 0 : i32
    %c0_i32_0 = arith.constant 0 : i32
    return %c0_i32, %arg0 : i32, i32
  }
  func.func @transform_3(%arg0: i32) -> (i32, i32) {
    %c0_i32 = arith.constant 0 : i32
    %c0_i32_0 = arith.constant 0 : i32
    return %c0_i32, %arg0 : i32, i32
  }
  func.func @transform_4(%arg0: i32) -> (i32, i32) {
    %c0_i32 = arith.constant 0 : i32
    %c0_i32_0 = arith.constant 0 : i32
    return %c0_i32, %arg0 : i32, i32
  }
}

</mosaic_0001>

<llo_original>
// kernel: tpu_custom_call.1
$region0: #{tpu_custom_call.1}
  #allocation0 [shape = 'u32[]', space=smem, size = 0x4, offset = 0x4, fixed_abs, tag = 'smem constant byte address 0x4 - core index']
  #allocation1 [shape = 'u32[72,128]{1,0:T(1,128)}', space=vmem, size = 0x9000, scoped, tag = 'internal scratch']
  %s0 = inlined_call_operand.vmem [shape: f32[4,32], index: 0, kind: input, shape index: {}]
  %s1 = inlined_call_operand.vmem [shape: f32[4,1], index: 1, kind: input, shape index: {}]
  %s2 = inlined_call_operand.vmem [shape: f32[32,4], index: 2, kind: input, shape index: {}]
  %s3 = inlined_call_operand.vmem [shape: f32[1,4], index: 3, kind: input, shape index: {}]
  %s4 = inlined_call_operand.hbm [shape: f32[1,4], index: 4, kind: output, shape index: {}]
  %s5 = sld [smem:[#allocation0]]
  $region26: #{tpu_custom_call.1} parent=0
    _
  %s7 = ssub.s32 1, %s5
  %s8 = scalar_select 0, %s7, %s5
  $region1: #{tpu_custom_call.1} parent=0
    #allocation2 [shape = 'u8[512]{0}', space=vmem, size = 0x400, scoped, tag = 'output window, operand 0, single buffered']
    #allocation3 [shape = 's32[1]{0}', space=sflag, size = 0x4, scoped, tag = 'scoped memory for tpu_custom_call.1']
    %9 = vsyncpa [#allocation3], 0
    // Predicated region
    $region2: #{tpu_custom_call.1} parent=1 // pred_check
      _
    $region3: #{tpu_custom_call.1} parent=1 // pred_check_branch
      %11 = sbr.rel (0) target = $region5
    $region4: #{tpu_custom_call.1} parent=1 // pred_region
      _
    $region5: #{tpu_custom_call.1} parent=1 // pred_fallthru
      _
    // Predicated region
    $region6: #{tpu_custom_call.1} parent=1 // pred_check
      _
    $region7: #{tpu_custom_call.1} parent=1 // pred_check_branch
      %13 = sbr.rel (0) target = $region9
    $region8: #{tpu_custom_call.1} parent=1 // pred_region
      _
    $region9: #{tpu_custom_call.1} parent=1 // pred_fallthru
      _
    // Predicated region
    $region10: #{tpu_custom_call.1} parent=1 // pred_check
      _
    $region11: #{tpu_custom_call.1} parent=1 // pred_check_branch
      %15 = sbr.rel (0) target = $region13
    $region12: #{tpu_custom_call.1} parent=1 // pred_region
      _
    $region13: #{tpu_custom_call.1} parent=1 // pred_fallthru
      _
    // Predicated region
    $region14: #{tpu_custom_call.1} parent=1 // pred_check
      _
    $region15: #{tpu_custom_call.1} parent=1 // pred_check_branch
      %17 = sbr.rel (0) target = $region17
    $region16: #{tpu_custom_call.1} parent=1 // pred_region
      _
    $region17: #{tpu_custom_call.1} parent=1 // pred_fallthru
      _
    %v18 = vld [vmem:[%s0] sm:$0xf]
    %v19 = vld [vmem:[%s2] sm:$0xff]
    %v20 = vld [vmem:[%s2 + $0x8] sm:$0xff]
    %v21 = vld [vmem:[%s2 + $0x10] sm:$0xff]
    %v22 = vld [vmem:[%s2 + $0x18] sm:$0xff]
    %vm23 = vcmask 261120
    %v25 = vsel %vm23, %v18, 0
    %27 = vmatpush.msra.mxu0 0.0
    %28 = vmatpush.msra.mxu0 0.0
    %29 = vmatpush.msra.mxu0 0.0
    %30 = vmatpush.msra.mxu0 0.0
    %31 = vmatpush.msra.mxu0 0.0
    %32 = vmatpush.msra.mxu0 0.0
    %33 = vmatpush.msra.mxu0 0.0
    %34 = vmatpush.msra.mxu0 0.0
    %35 = vmatpush.msra.mxu0 0.0
    %36 = vmatpush.msra.mxu0 0.0
    %37 = vmatpush.msra.mxu0 0.0
    %38 = vmatpush.msra.mxu0 0.0
    %39 = vmatpush.msra.mxu0 %v22
    %40 = vmatpush.msra.mxu0 %v21
    %41 = vmatpush.msra.mxu0 %v20
    %42 = vmatpush.msra.mxu0 %v19
    %43 = vmatmul.f32.gmra.mxu0 %v25
    %v44 = vpop.f32.mrf.mxu0
    %v45 = vadd.f32 0.0, %v44
    %46 = vdwg.mxu0
    %v47 = vld [vmem:[%s1] sm:$0xf]
    %49 = vset.pattern.permute.xlu0 0
    %50 = vperm.xlu0 %49, %v47
    %v51 = vpop.permute.xlu0 %50
    %v53 = vsub.f32 %v51, %v45
    %vm54 = vcmask 27648
    %v55 = vsel %vm54, %v53, -inf
    %v56 = vrot.slane %v55, 4
    %v57 = vmax.f32 %v55, %v56
    %v58 = vrot.slane %v57, 2
    %v59 = vmax.f32 %v57, %v58
    %v60 = vrot.slane %v59, 1
    %v61 = vmax.f32 %v59, %v60
    %v62 = vadd.f32 %v61, %v61
    %v63 = vld [vmem:[%s3] sm:$0x1]
    %v64 = vadd.f32 %v62, %v63
    %v65 = vmax.f32 %v64, 0.0
    %v66 = vrsqrt.pop %v65
    %v67 = vmul.f32 %v66, %v65
    %v68 = vmul.f32 %v67, %v66
    %v69 = vmul.f32 0.5, %v68
    %v70 = vsub.f32 1.5, %v69
    %v71 = vmul.f32 %v66, %v70
    %v72 = vmul.f32 %v65, %v71
    %vm73 = vcmp.eq.f32.partialorder %v65, inf
    %v74 = vsel %vm73, %v65, %v72
    %vm75 = vcmp.eq.f32.partialorder %v65, 0.0
    %v76 = vand.u32 %v65, 2147483648
    %v77 = vsel %vm75, %v76, %v74
    %vm78 = vcmask 24576
    %79 = vst.msk [vmem:[#allocation2] sm:$0x1] %vm78, %v77
    // Predicated region
    $region18: #{tpu_custom_call.1} parent=1 // pred_check
      _
    $region19: #{tpu_custom_call.1} parent=1 // pred_check_branch
      %81 = sbr.rel (0) target = $region21
    $region20: #{tpu_custom_call.1} parent=1 // pred_region
      %83 = vsyncadd [#allocation3], 0
      %s85 = sshll.u32 [#allocation2], 4
      %s86 = int_to_ptr.vmem [resolvable:$true] %s85
      %s87 = sshll.u32 %s4, 4
      %s88 = int_to_ptr.hbm [resolvable:$true] %s87
      %90 = dma.vmem_to_hbm [thread:$0]  %s86, 16, %s88, [#allocation3]
    $region21: #{tpu_custom_call.1} parent=1 // pred_fallthru
      _
    // Predicated region
    $region22: #{tpu_custom_call.1} parent=1 // pred_check
      _
    $region23: #{tpu_custom_call.1} parent=1 // pred_check_branch
      %92 = sbr.rel (0) target = $region25
    $region24: #{tpu_custom_call.1} parent=1 // pred_region
      %94 = dma.done [#allocation3], 16
    $region25: #{tpu_custom_call.1} parent=1 // pred_fallthru
      _
    %95 = vsyncpa [#allocation3], 1

</llo_original>
